<compile_context>
chip_gen: v6e
topology: v6e:2x2x1
jax: 0.10.0
libtpu: 0.0.40
codegen_flags: <defaults>
</compile_context>

<pallas_src>
import functools

import jax
import jax.numpy as jnp
from jax.experimental import pallas as pl
from jax.experimental.pallas import tpu as pltpu


def _skipgram_kernel(emb_ref, w_ref, b_ref, out_ref, m_ref, l_ref, *, tn):
    """grid = (batch_chunk, vocab_tile).

    emb_ref : (b_chunk, Z)      compute-dtype, resident (index (bi, 0))
    w_ref   : (Z, tn)           compute-dtype vocab tile
    b_ref   : (1, tn)           f32 bias tile (padded cols = -1e30)
    out_ref : (b_chunk, V_pad)  f32, resident across the vocab-tile axis
    m_ref   : (b_chunk, 1)      f32 running max
    l_ref   : (b_chunk, 1)      f32 running sum-of-exp
    """
    t = pl.program_id(1)
    nt = pl.num_programs(1)

    @pl.when(t == 0)
    def _init():
        m_ref[...] = jnp.full_like(m_ref, -jnp.inf)
        l_ref[...] = jnp.zeros_like(l_ref)

    # (b_chunk, Z) @ (Z, tn) on the MXU, f32 accumulation; bias added in f32.
    scores = jnp.dot(emb_ref[...], w_ref[...],
                     preferred_element_type=jnp.float32) + b_ref[...]

    # Online max / sum-of-exp update.
    m_prev = m_ref[...]
    m_new = jnp.maximum(m_prev, jnp.max(scores, axis=-1, keepdims=True))
    l_ref[...] = (l_ref[...] * jnp.exp(m_prev - m_new)
                  + jnp.sum(jnp.exp(scores - m_new), axis=-1, keepdims=True))
    m_ref[...] = m_new

    # Stash unnormalized scores straight into the resident output block.
    col = pl.multiple_of(t * tn, 128)
    out_ref[:, pl.ds(col, tn)] = scores

    @pl.when(t == nt - 1)
    def _finalize():
        lse = m_ref[...] + jnp.log(l_ref[...])
        out_ref[...] = out_ref[...] - lse


def prepare_skipgram_weights(w_out, b_out, *, tile_n=None,
                             compute_dtype=jnp.bfloat16):
    """One-time weight prep (hoisted out of the forward path).

    w_out : (Z, VOCAB) f32   (torch Linear.weight transposed)
    b_out : (VOCAB,)   f32
    Returns (w_padded[compute_dtype], b_padded[f32, 1 x V_pad], tn).
    """
    z_dim, vocab = w_out.shape
    lane_vocab = pl.cdiv(vocab, 128) * 128
    if tile_n is None:
        # Largest lane tile such that the W tile is ~1-2 MiB (capped at 16384).
        bytes_per_col = z_dim * jnp.dtype(compute_dtype).itemsize
        tile_n = min(16384, max(128, (2 * 1024 * 1024) // bytes_per_col))
    tn = max(128, (int(tile_n) // 128) * 128)
    tn = min(tn, lane_vocab)
    v_pad = pl.cdiv(vocab, tn) * tn

    w_p = jnp.pad(w_out, ((0, 0), (0, v_pad - vocab))).astype(compute_dtype)
    # Padded bias columns get a huge negative value so they never affect
    # max / sum-of-exp (f32 output, so no -inf issues; sliced off anyway).
    b_p = jnp.pad(b_out.astype(jnp.float32).reshape(1, vocab),
                  ((0, 0), (0, v_pad - vocab)), constant_values=-1e30)
    return w_p, b_p, tn


def skipgram_forward(input_word, emb_table, w_padded, b_padded, tn):
    """Pallas forward pass of SkipGram.

    input_word : (B,) int
    emb_table  : (VOCAB, Z) f32
    w_padded, b_padded, tn : from prepare_skipgram_weights()
    returns    : (B, VOCAB) f32 log-probabilities
    """
    vocab, z_dim = emb_table.shape
    v_pad = w_padded.shape[1]
    assert v_pad % tn == 0
    nt = v_pad // tn
    compute_dtype = w_padded.dtype
    batch = input_word.shape[0]

    # Batch padded to a sublane multiple of 8; split into two "parallel" chunks
    # (one per v7x TensorCore) when both halves stay sublane-aligned.
    b_pad = max(8, pl.cdiv(batch, 8) * 8)
    n_b = 2 if (b_pad >= 16 and b_pad % 16 == 0) else 1
    b_chunk = b_pad // n_b

    # Gather + pad + cast in the wrapper: B*Z elements, trivial traffic, and it
    # keeps per-row DMAs / semaphores off the kernel's critical path.
    idx = jnp.clip(input_word.astype(jnp.int32), 0, vocab - 1)
    emb = jnp.take(emb_table, idx, axis=0)
    emb = jnp.pad(emb, ((0, b_pad - batch), (0, 0))).astype(compute_dtype)

    kernel = functools.partial(_skipgram_kernel, tn=tn)

    # VMEM budget: resident output block + double-buffered W/bias tiles + misc.
    itemsize = jnp.dtype(compute_dtype).itemsize
    need = (2 * b_chunk * v_pad * 4          # resident output block (2 bufs)
            + 2 * z_dim * tn * itemsize      # W tile, double-buffered
            + 2 * tn * 4                     # bias tile, double-buffered
            + 2 * b_chunk * z_dim * itemsize  # embeddings input
            + 4 * b_chunk * 4)               # m/l scratch
    vmem_limit = int(min(100 * 1024 * 1024, max(32 * 1024 * 1024, 2 * need)))

    grid_spec = pltpu.PrefetchScalarGridSpec(
        num_scalar_prefetch=0,
        grid=(n_b, nt),                      # (batch chunk, vocab tile)
        in_specs=[
            pl.BlockSpec((b_chunk, z_dim), lambda bi, t: (bi, 0)),  # embeddings
            pl.BlockSpec((z_dim, tn),      lambda bi, t: (0, t)),   # W tile
            pl.BlockSpec((1, tn),          lambda bi, t: (0, t)),   # bias tile
        ],
        # Output block index is constant along the vocab-tile axis -> the whole
        # (b_chunk, V_pad) slab stays resident in VMEM until the LSE subtract.
        out_specs=pl.BlockSpec((b_chunk, v_pad), lambda bi, t: (bi, 0)),
        scratch_shapes=[
            pltpu.VMEM((b_chunk, 1), jnp.float32),   # running max
            pltpu.VMEM((b_chunk, 1), jnp.float32),   # running sum-of-exp
        ],
    )

    out = pl.pallas_call(
        kernel,
        out_shape=jax.ShapeDtypeStruct((b_pad, v_pad), jnp.float32),
        grid_spec=grid_spec,
        compiler_params=pltpu.CompilerParams(
            dimension_semantics=("parallel", "arbitrary"),
            vmem_limit_bytes=vmem_limit),
    )(emb, w_padded, b_padded)

    return out[:batch, :vocab]


if __name__ == "__main__":
    B, Z, VOCAB = 5, 32, 1000

    key = jax.random.PRNGKey(0)
    k_idx, k_emb, k_w, k_b = jax.random.split(key, 4)

    # Parameter init mirroring PyTorch defaults:
    #   nn.Embedding -> N(0, 1);  nn.Linear -> U(-1/sqrt(Z), 1/sqrt(Z)).
    emb_table = jax.random.normal(k_emb, (VOCAB, Z), dtype=jnp.float32)
    bound = 1.0 / (Z ** 0.5)
    w_out = jax.random.uniform(k_w, (Z, VOCAB), jnp.float32, -bound, bound)
    b_out = jax.random.uniform(k_b, (VOCAB,), jnp.float32, -bound, bound)
    input_word = jax.random.randint(k_idx, (B,), 0, VOCAB, dtype=jnp.int32)

    # One-time weight prep (cache and reuse across forward calls).
    w_p, b_p, tn = prepare_skipgram_weights(w_out, b_out)

    log_ps = skipgram_forward(input_word, emb_table, w_p, b_p, tn)
    log_ps = jax.block_until_ready(log_ps)

    # Reference with matching bf16 matmul precision (f32 accumulation).
    emb = jnp.take(emb_table, input_word, axis=0)
    scores_bf16 = jnp.dot(emb.astype(jnp.bfloat16), w_out.astype(jnp.bfloat16),
                          preferred_element_type=jnp.float32) + b_out
    ref_bf16 = jax.nn.log_softmax(scores_bf16, axis=1)

    # Full-f32 reference as a semantic sanity check (looser tolerance: bf16 W).
    ref_f32 = jax.nn.log_softmax(emb @ w_out + b_out, axis=1)

    assert log_ps.shape == (B, VOCAB)
    assert jnp.allclose(log_ps, ref_bf16, atol=1e-4, rtol=1e-4), \
        "mismatch vs bf16-precision reference"
    assert jnp.allclose(log_ps, ref_f32, atol=1e-1, rtol=1e-2), \
        "mismatch vs f32 reference"

    print("KERNEL_OK")
</pallas_src>

<mosaic_0001>
module attributes {stable_mosaic.version = 11 : i64} {
  func.func @_skipgram_kernel(%arg0: i32, %arg1: i32, %arg2: memref<8x32xbf16, #tpu.memory_space<vmem>>, %arg3: memref<32x1024xbf16, #tpu.memory_space<vmem>>, %arg4: memref<1x1024xf32, #tpu.memory_space<vmem>>, %arg5: memref<8x1024xf32, #tpu.memory_space<vmem>>, %arg6: memref<8x1xf32, #tpu.memory_space<vmem>>, %arg7: memref<8x1xf32, #tpu.memory_space<vmem>>) attributes {dimension_semantics = [#tpu.dimension_semantics<parallel>, #tpu.dimension_semantics<arbitrary>], iteration_bounds = array<i64: 1, 1>, scalar_prefetch = 0 : i64, scratch_operands = 2 : i64, tpu.core_type = #tpu.core_type<tc>, window_params = [{transform_indices = @transform_0, window_bounds = array<i64: 8, 32>}, {transform_indices = @transform_1, window_bounds = array<i64: 32, 1024>}, {transform_indices = @transform_2, window_bounds = array<i64: 1, 1024>}, {transform_indices = @transform_3, window_bounds = array<i64: 8, 1024>}]} {
    %c0_i32 = arith.constant 0 : i32
    %0 = arith.cmpi eq, %arg1, %c0_i32 : i32
    %1 = arith.extui %0 : i1 to i32
    %c0_i32_0 = arith.constant 0 : i32
    %2 = arith.cmpi ne, %1, %c0_i32_0 : i32
    scf.if %2 {
      %cst_19 = arith.constant 0xFF800000 : f32
      %32 = vector.broadcast %cst_19 : f32 to vector<8x1xf32>
      %c0_20 = arith.constant 0 : index
      %c0_21 = arith.constant 0 : index
      %33 = vector.load %arg6[%c0_20, %c0_21] : memref<8x1xf32, #tpu.memory_space<vmem>>, vector<8x1xf32>
      tpu.vector_store %arg6[%c0_20, %c0_21], %32 {strides = array<i32>} : memref<8x1xf32, #tpu.memory_space<vmem>>, vector<8x1xf32>,
      %cst_22 = arith.constant 0.000000e+00 : f32
      %34 = vector.broadcast %cst_22 : f32 to vector<8x1xf32>
      %c0_23 = arith.constant 0 : index
      %c0_24 = arith.constant 0 : index
      %35 = vector.load %arg7[%c0_23, %c0_24] : memref<8x1xf32, #tpu.memory_space<vmem>>, vector<8x1xf32>
      tpu.vector_store %arg7[%c0_23, %c0_24], %34 {strides = array<i32>} : memref<8x1xf32, #tpu.memory_space<vmem>>, vector<8x1xf32>,
    } else {
    }
    %c0 = arith.constant 0 : index
    %c0_1 = arith.constant 0 : index
    %3 = vector.load %arg2[%c0, %c0_1] : memref<8x32xbf16, #tpu.memory_space<vmem>>, vector<8x32xbf16>
    %c0_2 = arith.constant 0 : index
    %c0_3 = arith.constant 0 : index
    %4 = vector.load %arg3[%c0_2, %c0_3] : memref<32x1024xbf16, #tpu.memory_space<vmem>>, vector<32x1024xbf16>
    %cst = arith.constant dense<0.000000e+00> : vector<8x1024xf32>
    %5 = tpu.matmul %3, %4, %cst {dimension_numbers = #tpu.dot_dimension_numbers<[1], [0], [0], [1], [0, 0, 1, 1], [], []>} : vector<8x32xbf16>, vector<32x1024xbf16>, vector<8x1024xf32> -> vector<8x1024xf32>
    %c0_4 = arith.constant 0 : index
    %c0_5 = arith.constant 0 : index
    %6 = vector.load %arg4[%c0_4, %c0_5] : memref<1x1024xf32, #tpu.memory_space<vmem>>, vector<1x1024xf32>
    %7 = vector.broadcast %6 : vector<1x1024xf32> to vector<8x1024xf32>
    %8 = arith.addf %5, %7 : vector<8x1024xf32>
    %c0_6 = arith.constant 0 : index
    %c0_7 = arith.constant 0 : index
    %9 = vector.load %arg6[%c0_6, %c0_7] : memref<8x1xf32, #tpu.memory_space<vmem>>, vector<8x1xf32>
    %cst_8 = arith.constant dense<0xFF800000> : vector<8xf32>
    %10 = vector.multi_reduction <maximumf>, %8, %cst_8 [1] : vector<8x1024xf32> to vector<8xf32>
    %11 = vector.shape_cast %10 : vector<8xf32> to vector<8x1xf32>
    %12 = arith.maximumf %9, %11 : vector<8x1xf32>
    %c0_9 = arith.constant 0 : index
    %c0_10 = arith.constant 0 : index
    %13 = vector.load %arg7[%c0_9, %c0_10] : memref<8x1xf32, #tpu.memory_space<vmem>>, vector<8x1xf32>
    %14 = arith.subf %9, %12 : vector<8x1xf32>
    %15 = math.exp %14 : vector<8x1xf32>
    %16 = arith.mulf %13, %15 : vector<8x1xf32>
    %17 = vector.broadcast %12 : vector<8x1xf32> to vector<8x1024xf32>
    %18 = arith.subf %8, %17 : vector<8x1024xf32>
    %19 = math.exp %18 : vector<8x1024xf32>
    %cst_11 = arith.constant dense<0.000000e+00> : vector<8xf32>
    %20 = vector.multi_reduction <add>, %19, %cst_11 [1] : vector<8x1024xf32> to vector<8xf32>
    %21 = vector.shape_cast %20 : vector<8xf32> to vector<8x1xf32>
    %22 = arith.addf %16, %21 : vector<8x1xf32>
    %c0_12 = arith.constant 0 : index
    %c0_13 = arith.constant 0 : index
    %23 = vector.load %arg7[%c0_12, %c0_13] : memref<8x1xf32, #tpu.memory_space<vmem>>, vector<8x1xf32>
    tpu.vector_store %arg7[%c0_12, %c0_13], %22 {strides = array<i32>} : memref<8x1xf32, #tpu.memory_space<vmem>>, vector<8x1xf32>,
    %c0_14 = arith.constant 0 : index
    %c0_15 = arith.constant 0 : index
    %24 = vector.load %arg6[%c0_14, %c0_15] : memref<8x1xf32, #tpu.memory_space<vmem>>, vector<8x1xf32>
    tpu.vector_store %arg6[%c0_14, %c0_15], %12 {strides = array<i32>} : memref<8x1xf32, #tpu.memory_space<vmem>>, vector<8x1xf32>,
    %c1024_i32 = arith.constant 1024 : i32
    %25 = arith.muli %arg1, %c1024_i32 : i32
    %26 = tpu.assume_multiple %25, 128 : i32
    %c0_16 = arith.constant 0 : index
    %27 = arith.index_cast %26 : i32 to index
    %28 = vector.load %arg5[%c0_16, %27] : memref<8x1024xf32, #tpu.memory_space<vmem>>, vector<8x1024xf32>
    tpu.vector_store %arg5[%c0_16, %27], %8 {strides = array<i32>} : memref<8x1024xf32, #tpu.memory_space<vmem>>, vector<8x1024xf32>,
    %c0_i32_17 = arith.constant 0 : i32
    %29 = arith.cmpi eq, %arg1, %c0_i32_17 : i32
    %30 = arith.extui %29 : i1 to i32
    %c0_i32_18 = arith.constant 0 : i32
    %31 = arith.cmpi ne, %30, %c0_i32_18 : i32
    scf.if %31 {
      %c0_19 = arith.constant 0 : index
      %c0_20 = arith.constant 0 : index
      %32 = vector.load %arg6[%c0_19, %c0_20] : memref<8x1xf32, #tpu.memory_space<vmem>>, vector<8x1xf32>
      %c0_21 = arith.constant 0 : index
      %c0_22 = arith.constant 0 : index
      %33 = vector.load %arg7[%c0_21, %c0_22] : memref<8x1xf32, #tpu.memory_space<vmem>>, vector<8x1xf32>
      %34 = math.log %33 : vector<8x1xf32>
      %35 = arith.addf %32, %34 : vector<8x1xf32>
      %c0_23 = arith.constant 0 : index
      %c0_24 = arith.constant 0 : index
      %36 = vector.load %arg5[%c0_23, %c0_24] : memref<8x1024xf32, #tpu.memory_space<vmem>>, vector<8x1024xf32>
      %37 = vector.broadcast %35 : vector<8x1xf32> to vector<8x1024xf32>
      %38 = arith.subf %36, %37 : vector<8x1024xf32>
      %c0_25 = arith.constant 0 : index
      %c0_26 = arith.constant 0 : index
      %39 = vector.load %arg5[%c0_25, %c0_26] : memref<8x1024xf32, #tpu.memory_space<vmem>>, vector<8x1024xf32>
      tpu.vector_store %arg5[%c0_25, %c0_26], %38 {strides = array<i32>} : memref<8x1024xf32, #tpu.memory_space<vmem>>, vector<8x1024xf32>,
    } else {
    }
    return
  }
  func.func @transform_0(%arg0: i32, %arg1: i32) -> (i32, i32) {
    %c0_i32 = arith.constant 0 : i32
    %c0_i32_0 = arith.constant 0 : i32
    return %arg0, %c0_i32 : i32, i32
  }
  func.func @transform_1(%arg0: i32, %arg1: i32) -> (i32, i32) {
    %c0_i32 = arith.constant 0 : i32
    %c0_i32_0 = arith.constant 0 : i32
    return %c0_i32, %arg1 : i32, i32
  }
  func.func @transform_2(%arg0: i32, %arg1: i32) -> (i32, i32) {
    %c0_i32 = arith.constant 0 : i32
    %c0_i32_0 = arith.constant 0 : i32
    return %c0_i32, %arg1 : i32, i32
  }
  func.func @transform_3(%arg0: i32, %arg1: i32) -> (i32, i32) {
    %c0_i32 = arith.constant 0 : i32
    %c0_i32_0 = arith.constant 0 : i32
    return %arg0, %c0_i32 : i32, i32
  }
}

</mosaic_0001>

<llo_original>
// kernel: tpu_custom_call.1
$region0: #{tpu_custom_call.1}
  #allocation0 [shape = 'u32[]', space=smem, size = 0x4, offset = 0x4, fixed_abs, tag = 'smem constant byte address 0x4 - core index']
  #allocation1 [shape = 'u32[144,128]{1,0:T(1,128)}', space=vmem, size = 0x12000, scoped, tag = 'internal scratch']
  #allocation2 [shape = 'f32[8,1]{1,0:T(8,128)}', space=vmem, size = 0x1000, scoped, tag = 'scratch operand']
  #allocation3 [shape = 'f32[8,1]{1,0:T(8,128)}', space=vmem, size = 0x1000, scoped, tag = 'scratch operand']
  %s0 = inlined_call_operand.hbm [shape: bf16[8,32], index: 0, kind: input, shape index: {}]
  %s1 = inlined_call_operand.hbm [shape: bf16[32,1024], index: 1, kind: input, shape index: {}]
  %s2 = inlined_call_operand.hbm [shape: f32[1,1024], index: 2, kind: input, shape index: {}]
  %s3 = inlined_call_operand.hbm [shape: f32[8,1024], index: 3, kind: output, shape index: {}]
  %s4 = sld [smem:[#allocation0]]
  $region42: #{tpu_custom_call.1} parent=0
    _
  %s6 = ssub.s32 1, %s4
  %s7 = scalar_select 0, %s6, %s4
  $region1: #{tpu_custom_call.1} parent=0
    #allocation4 [shape = 'u8[2048]{0}', space=vmem, size = 0x800, scoped, tag = 'input window, operand 0, single buffered']
    #allocation5 [shape = 's32[1]{0}', space=sflag, size = 0x4, scoped, tag = 'scoped memory for tpu_custom_call.1']
    #allocation6 [shape = 's32[1]{0}', space=sflag, size = 0x4, scoped, tag = 'scoped memory for tpu_custom_call.1']
    #allocation7 [shape = 'u8[65536]{0}', space=vmem, size = 0x10000, scoped, tag = 'input window, operand 1, single buffered']
    #allocation8 [shape = 's32[1]{0}', space=sflag, size = 0x4, scoped, tag = 'scoped memory for tpu_custom_call.1']
    #allocation9 [shape = 'u8[4096]{0}', space=vmem, size = 0x1000, scoped, tag = 'input window, operand 2, single buffered']
    #allocation10 [shape = 'u8[32768]{0}', space=vmem, size = 0x8000, scoped, tag = 'output window, operand 0, single buffered']
    %8 = vsyncpa [#allocation5], 0
    %9 = vsyncpa [#allocation8], 0
    %10 = vsyncpa [#allocation6], 0
    // Predicated region
    $region2: #{tpu_custom_call.1} parent=1 // pred_check
      _
    $region3: #{tpu_custom_call.1} parent=1 // pred_check_branch
      %12 = sbr.rel (0) target = $region5
    $region4: #{tpu_custom_call.1} parent=1 // pred_region
      %s14 = ssub.s32 64, 64
      %15 = vsyncadd [#allocation5], %s14
      %s17 = sshll.u32 [#allocation4], 4
      %s18 = int_to_ptr.vmem [resolvable:$true] %s17
      %20 = dma.hbm_to_vmem [thread:$0]  %s0, 64, %s18, [#allocation5]
    $region5: #{tpu_custom_call.1} parent=1 // pred_fallthru
      _
    // Predicated region
    $region6: #{tpu_custom_call.1} parent=1 // pred_check
      _
    $region7: #{tpu_custom_call.1} parent=1 // pred_check_branch
      %22 = sbr.rel (0) target = $region9
    $region8: #{tpu_custom_call.1} parent=1 // pred_region
      %s24 = ssub.s32 2048, 2048
      %25 = vsyncadd [#allocation8], %s24
      %s26 = sshll.u32 [#allocation7], 4
      %s27 = int_to_ptr.vmem [resolvable:$true] %s26
      %32 = dma.hbm_to_vmem [thread:$0]  %s1, 2048, %s27, [#allocation8], 512, 512, 32
    $region9: #{tpu_custom_call.1} parent=1 // pred_fallthru
      _
    // Predicated region
    $region10: #{tpu_custom_call.1} parent=1 // pred_check
      _
    $region11: #{tpu_custom_call.1} parent=1 // pred_check_branch
      %34 = sbr.rel (0) target = $region13
    $region12: #{tpu_custom_call.1} parent=1 // pred_region
      %s36 = ssub.s32 128, 128
      %37 = vsyncadd [#allocation8], %s36
      %s39 = sshll.u32 [#allocation9], 4
      %s40 = int_to_ptr.vmem [resolvable:$true] %s39
      %42 = dma.hbm_to_vmem [thread:$0]  %s2, 128, %s40, [#allocation8]
    $region13: #{tpu_custom_call.1} parent=1 // pred_fallthru
      _
    // Predicated region
    $region14: #{tpu_custom_call.1} parent=1 // pred_check
      _
    $region15: #{tpu_custom_call.1} parent=1 // pred_check_branch
      %44 = sbr.rel (0) target = $region17
    $region16: #{tpu_custom_call.1} parent=1 // pred_region
      %45 = dma.done [#allocation5], 64
    $region17: #{tpu_custom_call.1} parent=1 // pred_fallthru
      _
    // Predicated region
    $region18: #{tpu_custom_call.1} parent=1 // pred_check
      _
    $region19: #{tpu_custom_call.1} parent=1 // pred_check_branch
      %47 = sbr.rel (0) target = $region21
    $region20: #{tpu_custom_call.1} parent=1 // pred_region
      %48 = dma.done [#allocation8], 2048
    $region21: #{tpu_custom_call.1} parent=1 // pred_fallthru
      _
    // Predicated region
    $region22: #{tpu_custom_call.1} parent=1 // pred_check
      _
    $region23: #{tpu_custom_call.1} parent=1 // pred_check_branch
      %50 = sbr.rel (0) target = $region25
    $region24: #{tpu_custom_call.1} parent=1 // pred_region
      %51 = dma.done [#allocation8], 128
    $region25: #{tpu_custom_call.1} parent=1 // pred_fallthru
      _
    %p53 = scmp.eq.s32.totalorder 0, 0
    // Predicated region
    $region26: #{tpu_custom_call.1} parent=1 // pred_check
      %p54 = pneg %p53
    $region27: #{tpu_custom_call.1} parent=1 // pred_check_branch
      %56 = sbr.rel (%p54) target = $region29
    $region28: #{tpu_custom_call.1} parent=1 // pred_region
      %vm57 = vcmask 7168
      %58 = vst.msk [vmem:[#allocation2] sm:$0xff] %vm57, -inf
      %59 = vst.msk [vmem:[#allocation3] sm:$0xff] %vm57, 0.0
    $region29: #{tpu_custom_call.1} parent=1 // pred_fallthru
      _
    %v60 = vld [vmem:[#allocation4] sm:$0xf]
    %v61 = vld [vmem:[#allocation7] sm:$0xff]
    %v62 = vld [vmem:[#allocation7 + $0x8] sm:$0xff]
    %v63 = vld [vmem:[#allocation7 + $0x10] sm:$0xff]
    %v64 = vld [vmem:[#allocation7 + $0x18] sm:$0xff]
    %v65 = vld [vmem:[#allocation7 + $0x20] sm:$0xff]
    %v66 = vld [vmem:[#allocation7 + $0x28] sm:$0xff]
    %v67 = vld [vmem:[#allocation7 + $0x30] sm:$0xff]
    %v68 = vld [vmem:[#allocation7 + $0x38] sm:$0xff]
    %v69 = vld [vmem:[#allocation7 + $0x40] sm:$0xff]
    %v70 = vld [vmem:[#allocation7 + $0x48] sm:$0xff]
    %v71 = vld [vmem:[#allocation7 + $0x50] sm:$0xff]
    %v72 = vld [vmem:[#allocation7 + $0x58] sm:$0xff]
    %v73 = vld [vmem:[#allocation7 + $0x60] sm:$0xff]
    %v74 = vld [vmem:[#allocation7 + $0x68] sm:$0xff]
    %v75 = vld [vmem:[#allocation7 + $0x70] sm:$0xff]
    %v76 = vld [vmem:[#allocation7 + $0x78] sm:$0xff]
    %v77 = vld [vmem:[#allocation9] sm:$0xff]
    %v79 = vlaneseq
    %v80 = vshrl.u32 %v79, 7
    %v81 = vsub.s32 0, %v80
    %v82 = vrot.slane %v77, %v81
    %v83 = vlaneseq
    %v84 = vshrl.u32 %v83, 7
    %v85 = vsub.s32 1, %v84
    %v86 = vrot.slane %v77, %v85
    %v87 = vlaneseq
    %v88 = vshrl.u32 %v87, 7
    %v89 = vsub.s32 2, %v88
    %v90 = vrot.slane %v77, %v89
    %v91 = vlaneseq
    %v92 = vshrl.u32 %v91, 7
    %v93 = vsub.s32 3, %v92
    %v94 = vrot.slane %v77, %v93
    %v95 = vlaneseq
    %v96 = vshrl.u32 %v95, 7
    %v97 = vsub.s32 4, %v96
    %v98 = vrot.slane %v77, %v97
    %v99 = vlaneseq
    %v100 = vshrl.u32 %v99, 7
    %v101 = vsub.s32 5, %v100
    %v102 = vrot.slane %v77, %v101
    %v103 = vlaneseq
    %v104 = vshrl.u32 %v103, 7
    %v105 = vsub.s32 6, %v104
    %v106 = vrot.slane %v77, %v105
    %v107 = vlaneseq
    %v108 = vshrl.u32 %v107, 7
    %v109 = vsub.s32 7, %v108
    %v110 = vrot.slane %v77, %v109
    %v135 = vunpack.c.l.b16 %v61
    %v136 = vunpack.c.h.b16 %v61
    %v137 = vunpack.c.l.b16 %v62
    %v138 = vunpack.c.h.b16 %v62
    %v139 = vunpack.c.l.b16 %v63
    %v140 = vunpack.c.h.b16 %v63
    %v141 = vunpack.c.l.b16 %v64
    %v142 = vunpack.c.h.b16 %v64
    %v143 = vunpack.c.l.b16 %v65
    %v144 = vunpack.c.h.b16 %v65
    %v145 = vunpack.c.l.b16 %v66
    %v146 = vunpack.c.h.b16 %v66
    %v147 = vunpack.c.l.b16 %v67
    %v148 = vunpack.c.h.b16 %v67
    %v149 = vunpack.c.l.b16 %v68
    %v150 = vunpack.c.h.b16 %v68
    %v151 = vunpack.c.l.b16 %v69
    %v152 = vunpack.c.h.b16 %v69
    %v153 = vunpack.c.l.b16 %v70
    %v154 = vunpack.c.h.b16 %v70
    %v155 = vunpack.c.l.b16 %v71
    %v156 = vunpack.c.h.b16 %v71
    %v157 = vunpack.c.l.b16 %v72
    %v158 = vunpack.c.h.b16 %v72
    %v159 = vunpack.c.l.b16 %v73
    %v160 = vunpack.c.h.b16 %v73
    %v161 = vunpack.c.l.b16 %v74
    %v162 = vunpack.c.h.b16 %v74
    %v163 = vunpack.c.l.b16 %v75
    %v164 = vunpack.c.h.b16 %v75
    %v165 = vunpack.c.l.b16 %v76
    %v166 = vunpack.c.h.b16 %v76
    %v167 = vpack.c.b16 %v143, %v135
    %v168 = vpack.c.b16 %v144, %v136
    %v169 = vpack.c.b16 %v145, %v137
    %v170 = vpack.c.b16 %v146, %v138
    %v171 = vpack.c.b16 %v147, %v139
    %v172 = vpack.c.b16 %v148, %v140
    %v173 = vpack.c.b16 %v149, %v141
    %v174 = vpack.c.b16 %v150, %v142
    %v175 = vpack.c.b16 %v159, %v151
    %v176 = vpack.c.b16 %v160, %v152
    %v177 = vpack.c.b16 %v161, %v153
    %v178 = vpack.c.b16 %v162, %v154
    %v179 = vpack.c.b16 %v163, %v155
    %v180 = vpack.c.b16 %v164, %v156
    %v181 = vpack.c.b16 %v165, %v157
    %v182 = vpack.c.b16 %v166, %v158
    %vm199 = vcmask 261120
    %v201 = vsel %vm199, %v60, 0
    %203 = vmatprep.subr.bf16.mxu0 0
    %204 = vmatpush1.bf16.msra.mxu0 0
    %205 = vmatprep.subr.bf16.mxu0 0
    %206 = vmatpush1.bf16.msra.mxu0 0
    %207 = vmatprep.subr.bf16.mxu0 0
    %208 = vmatpush1.bf16.msra.mxu0 0
    %209 = vmatprep.subr.bf16.mxu0 0
    %210 = vmatpush1.bf16.msra.mxu0 0
    %211 = vmatprep.subr.bf16.mxu0 0
    %212 = vmatpush1.bf16.msra.mxu0 0
    %213 = vmatprep.subr.bf16.mxu0 0
    %214 = vmatpush1.bf16.msra.mxu0 0
    %215 = vmatprep.subr.bf16.mxu0 %v176
    %216 = vmatpush1.bf16.msra.mxu0 %v175
    %217 = vmatprep.subr.bf16.mxu0 %v168
    %218 = vmatpush1.bf16.msra.mxu0 %v167
    %219 = vmatprep.subr.bf16.mxu0 0
    %220 = vmatpush2.bf16.msra.mxu0 0
    %221 = vmatprep.subr.bf16.mxu0 0
    %222 = vmatpush2.bf16.msra.mxu0 0
    %223 = vmatprep.subr.bf16.mxu0 0
    %224 = vmatpush2.bf16.msra.mxu0 0
    %225 = vmatprep.subr.bf16.mxu0 0
    %226 = vmatpush2.bf16.msra.mxu0 0
    %227 = vmatprep.subr.bf16.mxu0 0
    %228 = vmatpush2.bf16.msra.mxu0 0
    %229 = vmatprep.subr.bf16.mxu0 0
    %230 = vmatpush2.bf16.msra.mxu0 0
    %231 = vmatprep.subr.bf16.mxu0 0
    %232 = vmatpush2.bf16.msra.mxu0 0
    %233 = vmatprep.subr.bf16.mxu0 0
    %234 = vmatpush2.bf16.msra.mxu0 0
    %235 = vmatprep.mubr.bf16.mxu0 0
    %236 = vmatmul.mubr.bf16.gmra.mxu0 %v201
    %v237 = vpop.f32.mrf.mxu0
    %v238 = vadd.f32 %v82, %v237
    %v239 = vpop.f32.mrf.mxu0
    %v240 = vadd.f32 %v86, %v239
    %v241 = vpop.f32.mrf.mxu0
    %v242 = vpop.f32.mrf.mxu0
    %243 = vdwg.mxu0
    %244 = vmatprep.subr.bf16.mxu0 0
    %245 = vmatpush1.bf16.msra.mxu0 0
    %246 = vmatprep.subr.bf16.mxu0 0
    %247 = vmatpush1.bf16.msra.mxu0 0
    %248 = vmatprep.subr.bf16.mxu0 0
    %249 = vmatpush1.bf16.msra.mxu0 0
    %250 = vmatprep.subr.bf16.mxu0 0
    %251 = vmatpush1.bf16.msra.mxu0 0
    %252 = vmatprep.subr.bf16.mxu0 0
    %253 = vmatpush1.bf16.msra.mxu0 0
    %254 = vmatprep.subr.bf16.mxu0 0
    %255 = vmatpush1.bf16.msra.mxu0 0
    %256 = vmatprep.subr.bf16.mxu0 %v178
    %257 = vmatpush1.bf16.msra.mxu0 %v177
    %258 = vmatprep.subr.bf16.mxu0 %v170
    %259 = vmatpush1.bf16.msra.mxu0 %v169
    %260 = vmatprep.subr.bf16.mxu0 0
    %261 = vmatpush2.bf16.msra.mxu0 0
    %262 = vmatprep.subr.bf16.mxu0 0
    %263 = vmatpush2.bf16.msra.mxu0 0
    %264 = vmatprep.subr.bf16.mxu0 0
    %265 = vmatpush2.bf16.msra.mxu0 0
    %266 = vmatprep.subr.bf16.mxu0 0
    %267 = vmatpush2.bf16.msra.mxu0 0
    %268 = vmatprep.subr.bf16.mxu0 0
    %269 = vmatpush2.bf16.msra.mxu0 0
    %270 = vmatprep.subr.bf16.mxu0 0
    %271 = vmatpush2.bf16.msra.mxu0 0
    %272 = vmatprep.subr.bf16.mxu0 0
    %273 = vmatpush2.bf16.msra.mxu0 0
    %274 = vmatprep.subr.bf16.mxu0 0
    %275 = vmatpush2.bf16.msra.mxu0 0
    %276 = vmatprep.mubr.bf16.mxu0 0
    %277 = vmatmul.mubr.bf16.gmra.mxu0 %v201
    %v278 = vpop.f32.mrf.mxu0
    %v279 = vadd.f32 %v90, %v278
    %v280 = vpop.f32.mrf.mxu0
    %v281 = vadd.f32 %v94, %v280
    %v282 = vpop.f32.mrf.mxu0
    %v283 = vpop.f32.mrf.mxu0
    %284 = vdwg.mxu0
    %285 = vmatprep.subr.bf16.mxu0 0
    %286 = vmatpush1.bf16.msra.mxu0 0
    %287 = vmatprep.subr.bf16.mxu0 0
    %288 = vmatpush1.bf16.msra.mxu0 0
    %289 = vmatprep.subr.bf16.mxu0 0
    %290 = vmatpush1.bf16.msra.mxu0 0
    %291 = vmatprep.subr.bf16.mxu0 0
    %292 = vmatpush1.bf16.msra.mxu0 0
    %293 = vmatprep.subr.bf16.mxu0 0
    %294 = vmatpush1.bf16.msra.mxu0 0
    %295 = vmatprep.subr.bf16.mxu0 0
    %296 = vmatpush1.bf16.msra.mxu0 0
    %297 = vmatprep.subr.bf16.mxu0 %v180
    %298 = vmatpush1.bf16.msra.mxu0 %v179
    %299 = vmatprep.subr.bf16.mxu0 %v172
    %300 = vmatpush1.bf16.msra.mxu0 %v171
    %301 = vmatprep.subr.bf16.mxu0 0
    %302 = vmatpush2.bf16.msra.mxu0 0
    %303 = vmatprep.subr.bf16.mxu0 0
    %304 = vmatpush2.bf16.msra.mxu0 0
    %305 = vmatprep.subr.bf16.mxu0 0
    %306 = vmatpush2.bf16.msra.mxu0 0
    %307 = vmatprep.subr.bf16.mxu0 0
    %308 = vmatpush2.bf16.msra.mxu0 0
    %309 = vmatprep.subr.bf16.mxu0 0
    %310 = vmatpush2.bf16.msra.mxu0 0
    %311 = vmatprep.subr.bf16.mxu0 0
    %312 = vmatpush2.bf16.msra.mxu0 0
    %313 = vmatprep.subr.bf16.mxu0 0
    %314 = vmatpush2.bf16.msra.mxu0 0
    %315 = vmatprep.subr.bf16.mxu0 0
    %316 = vmatpush2.bf16.msra.mxu0 0
    %317 = vmatprep.mubr.bf16.mxu0 0
    %318 = vmatmul.mubr.bf16.gmra.mxu0 %v201
    %v319 = vpop.f32.mrf.mxu0
    %v320 = vadd.f32 %v98, %v319
    %v321 = vpop.f32.mrf.mxu0
    %v322 = vadd.f32 %v102, %v321
    %v323 = vpop.f32.mrf.mxu0
    %v324 = vpop.f32.mrf.mxu0
    %325 = vdwg.mxu0
    %326 = vmatprep.subr.bf16.mxu0 0
    %327 = vmatpush1.bf16.msra.mxu0 0
    %328 = vmatprep.subr.bf16.mxu0 0
    %329 = vmatpush1.bf16.msra.mxu0 0
    %330 = vmatprep.subr.bf16.mxu0 0
    %331 = vmatpush1.bf16.msra.mxu0 0
    %332 = vmatprep.subr.bf16.mxu0 0
    %333 = vmatpush1.bf16.msra.mxu0 0
    %334 = vmatprep.subr.bf16.mxu0 0
    %335 = vmatpush1.bf16.msra.mxu0 0
    %336 = vmatprep.subr.bf16.mxu0 0
    %337 = vmatpush1.bf16.msra.mxu0 0
    %338 = vmatprep.subr.bf16.mxu0 %v182
    %339 = vmatpush1.bf16.msra.mxu0 %v181
    %340 = vmatprep.subr.bf16.mxu0 %v174
    %341 = vmatpush1.bf16.msra.mxu0 %v173
    %342 = vmatprep.subr.bf16.mxu0 0
    %343 = vmatpush2.bf16.msra.mxu0 0
    %344 = vmatprep.subr.bf16.mxu0 0
    %345 = vmatpush2.bf16.msra.mxu0 0
    %346 = vmatprep.subr.bf16.mxu0 0
    %347 = vmatpush2.bf16.msra.mxu0 0
    %348 = vmatprep.subr.bf16.mxu0 0
    %349 = vmatpush2.bf16.msra.mxu0 0
    %350 = vmatprep.subr.bf16.mxu0 0
    %351 = vmatpush2.bf16.msra.mxu0 0
    %352 = vmatprep.subr.bf16.mxu0 0
    %353 = vmatpush2.bf16.msra.mxu0 0
    %354 = vmatprep.subr.bf16.mxu0 0
    %355 = vmatpush2.bf16.msra.mxu0 0
    %356 = vmatprep.subr.bf16.mxu0 0
    %357 = vmatpush2.bf16.msra.mxu0 0
    %358 = vmatprep.mubr.bf16.mxu0 0
    %359 = vmatmul.mubr.bf16.gmra.mxu0 %v201
    %v360 = vpop.f32.mrf.mxu0
    %v361 = vadd.f32 %v106, %v360
    %v362 = vpop.f32.mrf.mxu0
    %v363 = vadd.f32 %v110, %v362
    %v364 = vpop.f32.mrf.mxu0
    %v365 = vpop.f32.mrf.mxu0
    %366 = vdwg.mxu0
    %v367 = vld [vmem:[#allocation2] sm:$0xff]
    %v368 = vmax.f32 %v238, %v320
    %v369 = vmax.f32 %v240, %v322
    %v370 = vmax.f32 %v279, %v361
    %v371 = vmax.f32 %v281, %v363
    %v372 = vmax.f32 %v368, %v369
    %v373 = vmax.f32 %v370, %v371
    %v374 = vmax.f32 %v372, %v373
    %375 = vmax.xlane.f32.xlu0 %v374
    %v376 = vpop.xlane.xlu0 %375
    %v377 = vmax.f32 %v367, %v376
    %v378 = vld [vmem:[#allocation3] sm:$0xff]
    %v379 = vsub.f32 %v367, %v377
    %v380 = vmul.f32 %v379, 1.442695
    %v381 = vpow.pop %v380
    %v382 = vmul.f32 %v378, %v381
    %384 = vset.pattern.permute.xlu0 0
    %385 = vperm.xlu0 %384, %v377
    %v386 = vpop.permute.xlu0 %385
    %v388 = vsub.f32 %v238, %v386
    %v389 = vsub.f32 %v240, %v386
    %v390 = vsub.f32 %v279, %v386
    %v391 = vsub.f32 %v281, %v386
    %v392 = vsub.f32 %v320, %v386
    %v393 = vsub.f32 %v322, %v386
    %v394 = vsub.f32 %v361, %v386
    %v395 = vsub.f32 %v363, %v386
    %v396 = vmul.f32 %v388, 1.442695
    %v397 = vpow.pop %v396
    %v398 = vmul.f32 %v389, 1.442695
    %v399 = vpow.pop %v398
    %v400 = vmul.f32 %v390, 1.442695
    %v401 = vpow.pop %v400
    %v402 = vmul.f32 %v391, 1.442695
    %v403 = vpow.pop %v402
    %v404 = vmul.f32 %v392, 1.442695
    %v405 = vpow.pop %v404
    %v406 = vmul.f32 %v393, 1.442695
    %v407 = vpow.pop %v406
    %v408 = vmul.f32 %v394, 1.442695
    %v409 = vpow.pop %v408
    %v410 = vmul.f32 %v395, 1.442695
    %v411 = vpow.pop %v410
    %v412 = vadd.f32 %v397, %v399
    %v413 = vadd.f32 %v412, %v401
    %v414 = vadd.f32 %v413, %v403
    %v415 = vadd.f32 %v414, %v405
    %v416 = vadd.f32 %v415, %v407
    %v417 = vadd.f32 %v416, %v409
    %v418 = vadd.f32 %v417, %v411
    %419 = vadd.xlane.f32.xlu0 %v418
    %v420 = vpop.xlane.xlu0 %419
    %v421 = vadd.f32 %v382, %v420
    %vm422 = vcmask 7168
    %423 = vst.msk [vmem:[#allocation3] sm:$0xff] %vm422, %v421
    %424 = vst.msk [vmem:[#allocation2] sm:$0xff] %vm422, %v377
    %s425 = smul.u32 0, 1024
    %s426 = sshra.s32 %s425, 7
    %s427 = sand.u32 %s425, 127
    %s428 = smul.addr %s426, 8
    %s429 = scalar_lea.vmem [#allocation10], %s428
    %430 = vst [vmem:[%s429] sm:$0xff] %v238
    %431 = vst [vmem:[%s429 + $0x8] sm:$0xff] %v240
    %432 = vst [vmem:[%s429 + $0x10] sm:$0xff] %v279
    %433 = vst [vmem:[%s429 + $0x18] sm:$0xff] %v281
    %434 = vst [vmem:[%s429 + $0x20] sm:$0xff] %v320
    %435 = vst [vmem:[%s429 + $0x28] sm:$0xff] %v322
    %436 = vst [vmem:[%s429 + $0x30] sm:$0xff] %v361
    %437 = vst [vmem:[%s429 + $0x38] sm:$0xff] %v363
    // Predicated region
    $region30: #{tpu_custom_call.1} parent=1 // pred_check
      %p438 = pneg %p53
    $region31: #{tpu_custom_call.1} parent=1 // pred_check_branch
      %440 = sbr.rel (%p438) target = $region33
    $region32: #{tpu_custom_call.1} parent=1 // pred_region
      %v441 = vld [vmem:[#allocation2] sm:$0xff]
      %v442 = vld [vmem:[#allocation3] sm:$0xff]
      %v443 = vlog2.pop %v442
      %v444 = vmul.f32 %v443, 0.6931472
      %v445 = vadd.f32 %v441, %v444
      %v446 = vld [vmem:[#allocation10] sm:$0xff]
      %v447 = vld [vmem:[#allocation10 + $0x8] sm:$0xff]
      %v448 = vld [vmem:[#allocation10 + $0x10] sm:$0xff]
      %v449 = vld [vmem:[#allocation10 + $0x18] sm:$0xff]
      %v450 = vld [vmem:[#allocation10 + $0x20] sm:$0xff]
      %v451 = vld [vmem:[#allocation10 + $0x28] sm:$0xff]
      %v452 = vld [vmem:[#allocation10 + $0x30] sm:$0xff]
      %v453 = vld [vmem:[#allocation10 + $0x38] sm:$0xff]
      %455 = vset.pattern.permute.xlu0 0
      %456 = vperm.xlu0 %455, %v445
      %v457 = vpop.permute.xlu0 %456
      %v459 = vsub.f32 %v446, %v457
      %v460 = vsub.f32 %v447, %v457
      %v461 = vsub.f32 %v448, %v457
      %v462 = vsub.f32 %v449, %v457
      %v463 = vsub.f32 %v450, %v457
      %v464 = vsub.f32 %v451, %v457
      %v465 = vsub.f32 %v452, %v457
      %v466 = vsub.f32 %v453, %v457
      %467 = vst [vmem:[#allocation10] sm:$0xff] %v459
      %468 = vst [vmem:[#allocation10 + $0x8] sm:$0xff] %v460
      %469 = vst [vmem:[#allocation10 + $0x10] sm:$0xff] %v461
      %470 = vst [vmem:[#allocation10 + $0x18] sm:$0xff] %v462
      %471 = vst [vmem:[#allocation10 + $0x20] sm:$0xff] %v463
      %472 = vst [vmem:[#allocation10 + $0x28] sm:$0xff] %v464
      %473 = vst [vmem:[#allocation10 + $0x30] sm:$0xff] %v465
      %474 = vst [vmem:[#allocation10 + $0x38] sm:$0xff] %v466
    $region33: #{tpu_custom_call.1} parent=1 // pred_fallthru
      _
    // Predicated region
    $region34: #{tpu_custom_call.1} parent=1 // pred_check
      _
    $region35: #{tpu_custom_call.1} parent=1 // pred_check_branch
      %476 = sbr.rel (0) target = $region37
    $region36: #{tpu_custom_call.1} parent=1 // pred_region
      %s478 = ssub.s32 1024, 1024
      %479 = vsyncadd [#allocation6], %s478
      %s481 = sshll.u32 [#allocation10], 4
      %s482 = int_to_ptr.vmem [resolvable:$true] %s481
      %484 = dma.vmem_to_hbm [thread:$0]  %s482, 1024, %s3, [#allocation6]
    $region37: #{tpu_custom_call.1} parent=1 // pred_fallthru
      _
    // Predicated region
    $region38: #{tpu_custom_call.1} parent=1 // pred_check
      _
    $region39: #{tpu_custom_call.1} parent=1 // pred_check_branch
      %486 = sbr.rel (0) target = $region41
    $region40: #{tpu_custom_call.1} parent=1 // pred_region
      %487 = dma.done [#allocation6], 1024
    $region41: #{tpu_custom_call.1} parent=1 // pred_fallthru
      _
    %488 = vsyncpa [#allocation5], 1
    %489 = vsyncpa [#allocation8], 1
    %490 = vsyncpa [#allocation6], 1

</llo_original>
